<compile_context>
chip_gen: v7x
topology: tpu7x:2x2x1
jax: 0.10.0
libtpu: 0.0.40
codegen_flags: <defaults>
</compile_context>

<pallas_src>
import functools

import jax
import jax.numpy as jnp
from jax.experimental import pallas as pl
from jax.experimental.pallas import tpu as pltpu

HIDDEN_SIZE = 64


def _cdiv(a, b):
    return -(-a // b)


def _round_up(x, m):
    return _cdiv(x, m) * m


def mlp_kernel(x_ref, w1_ref, b1_ref, w2_ref, b2_ref, o_ref):
    # x_ref: (bm, in_dim)        w1_ref: (in_dim, hidden_p)  b1_ref: (1, hidden_p)
    # w2_ref: (hidden_p, out_p)  b2_ref: (1, out_p)          o_ref: (bm, out_p)
    # Cast x to the MXU compute dtype in-kernel (free on idle VPU slots;
    # avoids an extra XLA pass over x in the wrapper).
    x = x_ref[...].astype(w1_ref.dtype)
    h = jnp.dot(x, w1_ref[...], preferred_element_type=jnp.float32) + b1_ref[...]
    # Exact sigmoid via a single EUP tanh: sigmoid(h) = 0.5*(tanh(h/2)+1).
    h = 0.5 * (jnp.tanh(0.5 * h) + 1.0)
    y = jnp.dot(h.astype(w2_ref.dtype), w2_ref[...],
                preferred_element_type=jnp.float32) + b2_ref[...]
    o_ref[...] = y.astype(o_ref.dtype)


def _choose_batch_tile(B, in_dim, out_p, hidden_p, x_bytes, out_bytes,
                       cd_bytes, bm_target):
    """Even batch split, rounded to sublane multiples, capped by VMEM budget."""
    # Double-buffered x / out tiles + an f32 h-sized scratch per row.
    per_row = 2 * (in_dim * x_bytes + out_p * out_bytes) + hidden_p * 4
    # Resident (double-buffered) weights + f32 biases.
    fixed = 2 * cd_bytes * (in_dim * hidden_p + hidden_p * out_p) \
        + 4 * (hidden_p + out_p)
    budget = 24 * 1024 * 1024            # keep well under the 32 MiB scoped limit
    bm_cap = max(8, ((budget - fixed) // per_row // 8) * 8)
    bm_target = max(8, min(bm_target, bm_cap))

    n_tiles = _cdiv(B, bm_target)
    if B >= 16:
        n_tiles = max(n_tiles, 2)        # keep both v7x TensorCores busy
    bm_eff = _round_up(_cdiv(B, n_tiles), 8)
    b_pad = _cdiv(B, bm_eff) * bm_eff
    return bm_eff, b_pad


@functools.partial(
    jax.jit,
    static_argnames=("bm", "compute_dtype", "output_dtype", "xla_fallback_below"))
def fully_connected_network(x, w1, b1, w2, b2, *, bm=1024,
                            compute_dtype=jnp.bfloat16,
                            output_dtype=jnp.float32,
                            xla_fallback_below=0):
    """Forward pass of the 2-layer MLP (same semantics as the PyTorch module).

    x : (B, in_dim) float32
    w1: (hidden, in_dim)   (PyTorch nn.Linear weight layout)   b1: (hidden,)
    w2: (out_dim, hidden)                                       b2: (out_dim,)
    returns (B, out_dim) output_dtype

    compute_dtype: dtype fed to the MXU (bf16 default; f32 for exact math).
    xla_fallback_below: if B < this threshold, use a plain fused XLA matmul
    instead of the Pallas kernel (a single-grid-step launch is dominated by
    dispatch overhead for tiny batches).  Disabled (0) by default.
    """
    B, in_dim = x.shape
    hidden = w1.shape[0]
    out_dim = w2.shape[0]

    if B < xla_fallback_below:
        h = jax.nn.sigmoid(x @ w1.T + b1)
        return (h @ w2.T + b2).astype(output_dtype)

    # Lane-dense padded sizes for the hidden and output feature axes only.
    # in_dim is left unpadded: the x / W1 blocks use the full array extent,
    # so no wrapper-side copy of x is needed for the feature axis.
    hidden_p = _round_up(hidden, 128)
    out_p = _round_up(out_dim, 128)

    bm_eff, b_pad = _choose_batch_tile(
        B, in_dim, out_p, hidden_p,
        x.dtype.itemsize, jnp.dtype(output_dtype).itemsize,
        jnp.dtype(compute_dtype).itemsize, bm)

    # Weight / bias glue (tiny; fused by XLA inside this jit).  Zero-padded
    # hidden columns of W1/b1 and zero rows/columns of W2/b2 are exact:
    # sigmoid(0)=0.5 lands on zero W2 rows, padded outputs are sliced off.
    w1_t = jnp.zeros((in_dim, hidden_p), compute_dtype)
    w1_t = w1_t.at[:, :hidden].set(w1.T.astype(compute_dtype))
    b1_2d = jnp.zeros((1, hidden_p), jnp.float32)
    b1_2d = b1_2d.at[:, :hidden].set(b1.astype(jnp.float32))
    w2_t = jnp.zeros((hidden_p, out_p), compute_dtype)
    w2_t = w2_t.at[:hidden, :out_dim].set(w2.T.astype(compute_dtype))
    b2_2d = jnp.zeros((1, out_p), jnp.float32)
    b2_2d = b2_2d.at[:, :out_dim].set(b2.astype(jnp.float32))

    # Only copy x when actual batch padding is required (at most bm_eff-1 rows
    # thanks to the even split); dtype is left untouched (cast is in-kernel).
    x_p = x
    if b_pad != B:
        x_p = jnp.zeros((b_pad, in_dim), x.dtype).at[:B, :].set(x)

    grid = (b_pad // bm_eff,)
    out_padded = pl.pallas_call(
        mlp_kernel,
        out_shape=jax.ShapeDtypeStruct((b_pad, out_p), output_dtype),
        grid_spec=pltpu.PrefetchScalarGridSpec(
            num_scalar_prefetch=0,
            grid=grid,
            in_specs=[
                pl.BlockSpec((bm_eff, in_dim), lambda i: (i, 0)),      # x tile
                pl.BlockSpec((in_dim, hidden_p), lambda i: (0, 0)),    # W1 (resident)
                pl.BlockSpec((1, hidden_p), lambda i: (0, 0)),         # b1
                pl.BlockSpec((hidden_p, out_p), lambda i: (0, 0)),     # W2 (resident)
                pl.BlockSpec((1, out_p), lambda i: (0, 0)),            # b2
            ],
            out_specs=pl.BlockSpec((bm_eff, out_p), lambda i: (i, 0)),
        ),
        compiler_params=pltpu.CompilerParams(
            dimension_semantics=("parallel",),     # shards batch tiles across TCs
            vmem_limit_bytes=32 * 1024 * 1024),    # explicit (v5e default is 16 MiB)
    )(x_p, w1_t, b1_2d, w2_t, b2_2d)

    # Strip batch padding and output lane padding.
    return out_padded[:B, :out_dim]


def _ref_forward(x, w1, b1, w2, b2):
    h = jax.nn.sigmoid(x @ w1.T + b1)
    return h @ w2.T + b2


if __name__ == "__main__":
    # Small synthetic shapes consistent with the module:
    # train_x.shape[1] -> in_dim, train_y.shape[1] -> out_dim, hidden = 64.
    batch, in_dim, out_dim = 16, 256, 36

    key = jax.random.PRNGKey(0)
    kx, k1, k2, k3, k4 = jax.random.split(key, 5)

    x = jax.random.normal(kx, (batch, in_dim), dtype=jnp.float32)
    # Deterministic init mimicking nn.Linear's uniform(-1/sqrt(fan_in), +)
    lim1 = 1.0 / jnp.sqrt(in_dim)
    lim2 = 1.0 / jnp.sqrt(HIDDEN_SIZE)
    w1 = jax.random.uniform(k1, (HIDDEN_SIZE, in_dim), jnp.float32, -lim1, lim1)
    b1 = jax.random.uniform(k2, (HIDDEN_SIZE,), jnp.float32, -lim1, lim1)
    w2 = jax.random.uniform(k3, (out_dim, HIDDEN_SIZE), jnp.float32, -lim2, lim2)
    b2 = jax.random.uniform(k4, (out_dim,), jnp.float32, -lim2, lim2)

    ref = _ref_forward(x, w1, b1, w2, b2)

    # Default path: bf16 MXU inputs, f32 accumulation / sigmoid / output.
    out = jax.block_until_ready(fully_connected_network(x, w1, b1, w2, b2))
    assert out.shape == (batch, out_dim)
    assert jnp.allclose(out, ref, atol=2e-2, rtol=2e-2), "bf16 path mismatch"

    # Exact f32 path (tanh sigmoid is exact): tight tolerance.
    out_f32 = jax.block_until_ready(
        fully_connected_network(x, w1, b1, w2, b2, compute_dtype=jnp.float32))
    assert jnp.allclose(out_f32, ref, atol=1e-5, rtol=1e-5), "f32 path mismatch"

    # Ragged batch (B=50, not a multiple of the tile): exercises the even-split
    # batch padding path; f32 compute to verify padding is exact.
    xr = jax.random.normal(kx, (50, in_dim), dtype=jnp.float32)
    out_r = jax.block_until_ready(
        fully_connected_network(xr, w1, b1, w2, b2, compute_dtype=jnp.float32))
    ref_r = _ref_forward(xr, w1, b1, w2, b2)
    assert out_r.shape == (50, out_dim)
    assert jnp.allclose(out_r, ref_r, atol=1e-5, rtol=1e-5), "ragged mismatch"

    print("KERNEL_OK")
</pallas_src>

<mosaic_0001>
module attributes {stable_mosaic.version = 11 : i64} {
  func.func @mlp_kernel(%arg0: i32, %arg1: memref<8x256xf32, #tpu.memory_space<vmem>>, %arg2: memref<256x128xbf16, #tpu.memory_space<vmem>>, %arg3: memref<1x128xf32, #tpu.memory_space<vmem>>, %arg4: memref<128x128xbf16, #tpu.memory_space<vmem>>, %arg5: memref<1x128xf32, #tpu.memory_space<vmem>>, %arg6: memref<8x128xf32, #tpu.memory_space<vmem>>) attributes {dimension_semantics = [#tpu.dimension_semantics<parallel>], iteration_bounds = array<i64: 2>, scalar_prefetch = 0 : i64, scratch_operands = 0 : i64, tpu.core_type = #tpu.core_type<tc>, window_params = [{transform_indices = @transform_0, window_bounds = array<i64: 8, 256>}, {pipeline_mode = #tpu.pipeline_mode<synchronous>, transform_indices = @transform_1, window_bounds = array<i64: 256, 128>}, {pipeline_mode = #tpu.pipeline_mode<synchronous>, transform_indices = @transform_2, window_bounds = array<i64: 1, 128>}, {pipeline_mode = #tpu.pipeline_mode<synchronous>, transform_indices = @transform_3, window_bounds = array<i64: 128, 128>}, {pipeline_mode = #tpu.pipeline_mode<synchronous>, transform_indices = @transform_4, window_bounds = array<i64: 1, 128>}, {transform_indices = @transform_5, window_bounds = array<i64: 8, 128>}]} {
    %c0 = arith.constant 0 : index
    %c0_0 = arith.constant 0 : index
    %0 = vector.load %arg1[%c0, %c0_0] : memref<8x256xf32, #tpu.memory_space<vmem>>, vector<8x256xf32>
    %1 = arith.truncf %0 : vector<8x256xf32> to vector<8x256xbf16>
    %c0_1 = arith.constant 0 : index
    %c0_2 = arith.constant 0 : index
    %2 = vector.load %arg2[%c0_1, %c0_2] : memref<256x128xbf16, #tpu.memory_space<vmem>>, vector<256x128xbf16>
    %cst = arith.constant dense<0.000000e+00> : vector<8x128xf32>
    %3 = tpu.matmul %1, %2, %cst {dimension_numbers = #tpu.dot_dimension_numbers<[1], [0], [0], [1], [0, 0, 1, 1], [], []>} : vector<8x256xbf16>, vector<256x128xbf16>, vector<8x128xf32> -> vector<8x128xf32>
    %c0_3 = arith.constant 0 : index
    %c0_4 = arith.constant 0 : index
    %4 = vector.load %arg3[%c0_3, %c0_4] : memref<1x128xf32, #tpu.memory_space<vmem>>, vector<1x128xf32>
    %5 = vector.broadcast %4 : vector<1x128xf32> to vector<8x128xf32>
    %6 = arith.addf %3, %5 : vector<8x128xf32>
    %cst_5 = arith.constant 5.000000e-01 : f32
    %7 = vector.broadcast %cst_5 : f32 to vector<8x128xf32>
    %8 = arith.mulf %7, %6 : vector<8x128xf32>
    %9 = math.tanh %8 : vector<8x128xf32>
    %cst_6 = arith.constant 1.000000e+00 : f32
    %10 = vector.broadcast %cst_6 : f32 to vector<8x128xf32>
    %11 = arith.addf %9, %10 : vector<8x128xf32>
    %cst_7 = arith.constant 5.000000e-01 : f32
    %12 = vector.broadcast %cst_7 : f32 to vector<8x128xf32>
    %13 = arith.mulf %12, %11 : vector<8x128xf32>
    %14 = arith.truncf %13 : vector<8x128xf32> to vector<8x128xbf16>
    %c0_8 = arith.constant 0 : index
    %c0_9 = arith.constant 0 : index
    %15 = vector.load %arg4[%c0_8, %c0_9] : memref<128x128xbf16, #tpu.memory_space<vmem>>, vector<128x128xbf16>
    %cst_10 = arith.constant dense<0.000000e+00> : vector<8x128xf32>
    %16 = tpu.matmul %14, %15, %cst_10 {dimension_numbers = #tpu.dot_dimension_numbers<[1], [0], [0], [1], [0, 0, 1, 1], [], []>} : vector<8x128xbf16>, vector<128x128xbf16>, vector<8x128xf32> -> vector<8x128xf32>
    %c0_11 = arith.constant 0 : index
    %c0_12 = arith.constant 0 : index
    %17 = vector.load %arg5[%c0_11, %c0_12] : memref<1x128xf32, #tpu.memory_space<vmem>>, vector<1x128xf32>
    %18 = vector.broadcast %17 : vector<1x128xf32> to vector<8x128xf32>
    %19 = arith.addf %16, %18 : vector<8x128xf32>
    %c0_13 = arith.constant 0 : index
    %c0_14 = arith.constant 0 : index
    %20 = vector.load %arg6[%c0_13, %c0_14] : memref<8x128xf32, #tpu.memory_space<vmem>>, vector<8x128xf32>
    tpu.vector_store %arg6[%c0_13, %c0_14], %19 {strides = array<i32>} : memref<8x128xf32, #tpu.memory_space<vmem>>, vector<8x128xf32>,
    return
  }
  func.func @transform_0(%arg0: i32) -> (i32, i32) {
    %c0_i32 = arith.constant 0 : i32
    %c0_i32_0 = arith.constant 0 : i32
    return %arg0, %c0_i32 : i32, i32
  }
  func.func @transform_1(%arg0: i32) -> (i32, i32) {
    %c0_i32 = arith.constant 0 : i32
    %c0_i32_0 = arith.constant 0 : i32
    %c0_i32_1 = arith.constant 0 : i32
    return %c0_i32, %c0_i32_0 : i32, i32
  }
  func.func @transform_2(%arg0: i32) -> (i32, i32) {
    %c0_i32 = arith.constant 0 : i32
    %c0_i32_0 = arith.constant 0 : i32
    %c0_i32_1 = arith.constant 0 : i32
    return %c0_i32, %c0_i32_0 : i32, i32
  }
  func.func @transform_3(%arg0: i32) -> (i32, i32) {
    %c0_i32 = arith.constant 0 : i32
    %c0_i32_0 = arith.constant 0 : i32
    %c0_i32_1 = arith.constant 0 : i32
    return %c0_i32, %c0_i32_0 : i32, i32
  }
  func.func @transform_4(%arg0: i32) -> (i32, i32) {
    %c0_i32 = arith.constant 0 : i32
    %c0_i32_0 = arith.constant 0 : i32
    %c0_i32_1 = arith.constant 0 : i32
    return %c0_i32, %c0_i32_0 : i32, i32
  }
  func.func @transform_5(%arg0: i32) -> (i32, i32) {
    %c0_i32 = arith.constant 0 : i32
    %c0_i32_0 = arith.constant 0 : i32
    return %arg0, %c0_i32 : i32, i32
  }
}

</mosaic_0001>

<llo_original>
// kernel: fully_connected_network.1
$region0: #{fully_connected_network.1}
  #allocation0 [shape = 'u32[]', space=smem, size = 0x4, offset = 0x4, fixed_abs, tag = 'smem constant byte address 0x4 - core index']
  #allocation1 [shape = 'u32[144,128]{1,0:T(1,128)}', space=vmem, size = 0x12000, scoped, tag = 'internal scratch']
  %s0 = inlined_call_operand.vmem [shape: f32[16,256], index: 0, kind: input, shape index: {}]
  %s1 = inlined_call_operand.vmem [shape: bf16[256,128], index: 1, kind: input, shape index: {}]
  %s2 = inlined_call_operand.vmem [shape: f32[1,128], index: 2, kind: input, shape index: {}]
  %s3 = inlined_call_operand.vmem [shape: bf16[128,128], index: 3, kind: input, shape index: {}]
  %s4 = inlined_call_operand.vmem [shape: f32[1,128], index: 4, kind: input, shape index: {}]
  %s5 = inlined_call_operand.hbm [shape: f32[16,128], index: 5, kind: output, shape index: {}]
  %s6 = sld [smem:[#allocation0]]
  $region53: #{fully_connected_network.1} parent=0
    _
  %s8 = ssub.s32 1, %s6
  %s9 = scalar_select 0, %s8, %s6
  $region1: #{fully_connected_network.1} parent=0
    #allocation2 [shape = 'u8[8192]{0}', space=vmem, size = 0x2000, scoped, tag = 'output window, operand 0']
    #allocation3 [shape = 's32[2]{0}', space=sflag, size = 0x8, scoped, tag = 'scoped memory for fully_connected_network.1']
    %10 = vsyncpa [#allocation3], 0
    %s11 = scalar_lea.sflag [#allocation3], 1
    %12 = vsyncpa %s11, 0
    loop: start=0, step=1, limit=4
    $region2: #{fully_connected_network.1} parent=1 // loop_pre_header
      _
    $region3: #{fully_connected_network.1} parent=1 // loop_header
      %s14 = sphi 0, %s18
      %p15 = scmp.ge.s32.totalorder %s14, 4
      %s24 = sphi 0, %s26
      %s27 = sphi 0, %s24
      %s28 = sphi 0, %s27
      %s44 = sphi 0, %s28
      %s48 = sphi 0, %s48
      %s50 = sphi 0, %s48
      %s51 = sphi 0, %s50
      %s65 = sphi 0, %s51
      %s69 = sphi 0, %s69
      %s71 = sphi 0, %s69
      %s72 = sphi 0, %s71
      %s86 = sphi 0, %s72
      %s90 = sphi 0, %s90
      %s92 = sphi 0, %s90
      %s93 = sphi 0, %s92
      %s107 = sphi 0, %s93
      %s111 = sphi 0, %s111
      %s113 = sphi 0, %s111
      %s114 = sphi 0, %s113
      %s128 = sphi 0, %s114
      %s134 = sphi 0, %s136
      %s137 = sphi 0, %s134
      %s138 = sphi 0, %s137
      %s154 = sphi 0, %s138
    $region4: #{fully_connected_network.1} parent=1 // loop_header_branch
      %17 = sbr.rel (%p15) target = $region8
    $region5: #{fully_connected_network.1} parent=1 // loop_body
      %s19 = ssub.s32 %s14, 1
      %s20 = ssub.s32 %s14, 2
      %s21 = sadd.s32 %s14, 1
      %s22 = ssub.s32 %s14, %s21
      %p23 = scmp.eq.s32.totalorder %s22, 0
      %s25 = sadd.s32 %s24, 1
      %s26 = scalar_select %p23, %s24, %s25
      %p29 = pneg %p23
      %p30 = scmp.eq.s32.totalorder %s14, 1
      %p31 = por %p29, %p30
      %p32 = scmp.ne.s32.totalorder %s24, %s27
      %p33 = scmp.eq.s32.totalorder %s14, 0
      %p34 = por %p32, %p33
      %p35 = scmp.ne.s32.totalorder %s24, %s27
      %p36 = scmp.eq.s32.totalorder %s19, 1
      %p37 = por %p35, %p36
      %p38 = scmp.ne.s32.totalorder %s27, %s28
      %p39 = scmp.eq.s32.totalorder %s19, 0
      %p40 = por %p38, %p39
      %p41 = scmp.ne.s32.totalorder %s27, %s28
      %p42 = scmp.eq.s32.totalorder %s20, 1
      %p43 = por %p41, %p42
      %p45 = scmp.ne.s32.totalorder %s28, %s44
      %p46 = scmp.eq.s32.totalorder %s20, 0
      %p47 = por %p45, %p46
      %s49 = sadd.s32 %s48, 1
      %p52 = scmp.eq.s32.totalorder %s14, 1
      %p53 = scmp.ne.s32.totalorder %s48, %s50
      %p54 = scmp.eq.s32.totalorder %s14, 0
      %p55 = por %p53, %p54
      %p56 = scmp.ne.s32.totalorder %s48, %s50
      %p57 = scmp.eq.s32.totalorder %s19, 1
      %p58 = por %p56, %p57
      %p59 = scmp.ne.s32.totalorder %s50, %s51
      %p60 = scmp.eq.s32.totalorder %s19, 0
      %p61 = por %p59, %p60
      %p62 = scmp.ne.s32.totalorder %s50, %s51
      %p63 = scmp.eq.s32.totalorder %s20, 1
      %p64 = por %p62, %p63
      %p66 = scmp.ne.s32.totalorder %s51, %s65
      %p67 = scmp.eq.s32.totalorder %s20, 0
      %p68 = por %p66, %p67
      %s70 = sadd.s32 %s69, 1
      %p73 = scmp.eq.s32.totalorder %s14, 1
      %p74 = scmp.ne.s32.totalorder %s69, %s71
      %p75 = scmp.eq.s32.totalorder %s14, 0
      %p76 = por %p74, %p75
      %p77 = scmp.ne.s32.totalorder %s69, %s71
      %p78 = scmp.eq.s32.totalorder %s19, 1
      %p79 = por %p77, %p78
      %p80 = scmp.ne.s32.totalorder %s71, %s72
      %p81 = scmp.eq.s32.totalorder %s19, 0
      %p82 = por %p80, %p81
      %p83 = scmp.ne.s32.totalorder %s71, %s72
      %p84 = scmp.eq.s32.totalorder %s20, 1
      %p85 = por %p83, %p84
      %p87 = scmp.ne.s32.totalorder %s72, %s86
      %p88 = scmp.eq.s32.totalorder %s20, 0
      %p89 = por %p87, %p88
      %s91 = sadd.s32 %s90, 1
      %p94 = scmp.eq.s32.totalorder %s14, 1
      %p95 = scmp.ne.s32.totalorder %s90, %s92
      %p96 = scmp.eq.s32.totalorder %s14, 0
      %p97 = por %p95, %p96
      %p98 = scmp.ne.s32.totalorder %s90, %s92
      %p99 = scmp.eq.s32.totalorder %s19, 1
      %p100 = por %p98, %p99
      %p101 = scmp.ne.s32.totalorder %s92, %s93
      %p102 = scmp.eq.s32.totalorder %s19, 0
      %p103 = por %p101, %p102
      %p104 = scmp.ne.s32.totalorder %s92, %s93
      %p105 = scmp.eq.s32.totalorder %s20, 1
      %p106 = por %p104, %p105
      %p108 = scmp.ne.s32.totalorder %s93, %s107
      %p109 = scmp.eq.s32.totalorder %s20, 0
      %p110 = por %p108, %p109
      %s112 = sadd.s32 %s111, 1
      %p115 = scmp.eq.s32.totalorder %s14, 1
      %p116 = scmp.ne.s32.totalorder %s111, %s113
      %p117 = scmp.eq.s32.totalorder %s14, 0
      %p118 = por %p116, %p117
      %p119 = scmp.ne.s32.totalorder %s111, %s113
      %p120 = scmp.eq.s32.totalorder %s19, 1
      %p121 = por %p119, %p120
      %p122 = scmp.ne.s32.totalorder %s113, %s114
      %p123 = scmp.eq.s32.totalorder %s19, 0
      %p124 = por %p122, %p123
      %p125 = scmp.ne.s32.totalorder %s113, %s114
      %p126 = scmp.eq.s32.totalorder %s20, 1
      %p127 = por %p125, %p126
      %p129 = scmp.ne.s32.totalorder %s114, %s128
      %p130 = scmp.eq.s32.totalorder %s20, 0
      %p131 = por %p129, %p130
      %s132 = ssub.s32 %s14, %s21
      %p133 = scmp.eq.s32.totalorder %s132, 0
      %s135 = sadd.s32 %s134, 1
      %s136 = scalar_select %p133, %s134, %s135
      %p139 = pneg %p133
      %p140 = scmp.eq.s32.totalorder %s14, 1
      %p141 = por %p139, %p140
      %p142 = scmp.ne.s32.totalorder %s134, %s137
      %p143 = scmp.eq.s32.totalorder %s14, 0
      %p144 = por %p142, %p143
      %p145 = scmp.ne.s32.totalorder %s134, %s137
      %p146 = scmp.eq.s32.totalorder %s19, 1
      %p147 = por %p145, %p146
      %p148 = scmp.ne.s32.totalorder %s137, %s138
      %p149 = scmp.eq.s32.totalorder %s19, 0
      %p150 = por %p148, %p149
      %p151 = scmp.ne.s32.totalorder %s137, %s138
      %p152 = scmp.eq.s32.totalorder %s20, 1
      %p153 = por %p151, %p152
      %p155 = scmp.ne.s32.totalorder %s138, %s154
      %p156 = scmp.eq.s32.totalorder %s20, 0
      %p157 = por %p155, %p156
      %p158 = scmp.le.s32.totalorder 1, %s14
      %p159 = scmp.lt.s32.totalorder %s14, 3
      %p160 = pnand %p158, %p159
      %p161 = pneg %p160
      // Predicated region
      $region9: #{fully_connected_network.1} parent=5 // pred_check
        _
      $region10: #{fully_connected_network.1} parent=5 // pred_check_branch
        %163 = sbr.rel (%p160) target = $region12
      $region11: #{fully_connected_network.1} parent=5 // pred_region
        %s164 = ssub.s32 %s14, 1
        // Predicated region
        $region13: #{fully_connected_network.1} parent=11 // pred_check
          %p165 = pneg %p61
        $region14: #{fully_connected_network.1} parent=11 // pred_check_branch
          %167 = sbr.rel (%p165) target = $region16
        $region15: #{fully_connected_network.1} parent=11 // pred_region
          _
        $region16: #{fully_connected_network.1} parent=11 // pred_fallthru
          _
        // Predicated region
        $region17: #{fully_connected_network.1} parent=11 // pred_check
          %p168 = pneg %p82
        $region18: #{fully_connected_network.1} parent=11 // pred_check_branch
          %170 = sbr.rel (%p168) target = $region20
        $region19: #{fully_connected_network.1} parent=11 // pred_region
          _
        $region20: #{fully_connected_network.1} parent=11 // pred_fallthru
          _
        // Predicated region
        $region21: #{fully_connected_network.1} parent=11 // pred_check
          %p171 = pneg %p103
        $region22: #{fully_connected_network.1} parent=11 // pred_check_branch
          %173 = sbr.rel (%p171) target = $region24
        $region23: #{fully_connected_network.1} parent=11 // pred_region
          _
        $region24: #{fully_connected_network.1} parent=11 // pred_fallthru
          _
        // Predicated region
        $region25: #{fully_connected_network.1} parent=11 // pred_check
          %p174 = pneg %p124
        $region26: #{fully_connected_network.1} parent=11 // pred_check_branch
          %176 = sbr.rel (%p174) target = $region28
        $region27: #{fully_connected_network.1} parent=11 // pred_region
          _
        $region28: #{fully_connected_network.1} parent=11 // pred_fallthru
          _
      $region12: #{fully_connected_network.1} parent=5 // pred_fallthru
        _
      %p177 = scmp.lt.s32.totalorder %s14, 2
      // Predicated region
      $region29: #{fully_connected_network.1} parent=5 // pred_check
        %p178 = pneg %p177
      $region30: #{fully_connected_network.1} parent=5 // pred_check_branch
        %180 = sbr.rel (%p178) target = $region32
      $region31: #{fully_connected_network.1} parent=5 // pred_region
        // Predicated region
        $region33: #{fully_connected_network.1} parent=31 // pred_check
          %p181 = pneg %p34
        $region34: #{fully_connected_network.1} parent=31 // pred_check_branch
          %183 = sbr.rel (%p181) target = $region36
        $region35: #{fully_connected_network.1} parent=31 // pred_region
          %p184 = scmp.lt.s32.totalorder %s14, 1
          %s185 = scalar_select %p184, %s14, 1
          %s186 = smul.addr %s185, 2
          %s187 = smul.addr %s186, 8
          %s188 = scalar_lea.vmem %s0, %s187
        $region36: #{fully_connected_network.1} parent=31 // pred_fallthru
          _
      $region32: #{fully_connected_network.1} parent=5 // pred_fallthru
        _
      %p189 = scmp.le.s32.totalorder 1, %s14
      %p190 = scmp.lt.s32.totalorder %s14, 3
      %p191 = pnand %p189, %p190
      %p192 = pneg %p191
      // Predicated region
      $region37: #{fully_connected_network.1} parent=5 // pred_check
        _
      $region38: #{fully_connected_network.1} parent=5 // pred_check_branch
        %194 = sbr.rel (%p191) target = $region40
      $region39: #{fully_connected_network.1} parent=5 // pred_region
        %s195 = ssub.s32 %s14, 1
        %p196 = scmp.lt.s32.totalorder %s19, 1
        %s197 = scalar_select %p196, %s19, 1
        %s198 = smul.addr %s197, 2
        %s199 = smul.addr %s198, 8
        %s200 = scalar_lea.vmem %s0, %s199
        %p201 = pneg %p40
        %p202 = pneg %p37
        %p203 = pneg %p61
        %p204 = pneg %p58
        %p205 = pneg %p82
        %p206 = pneg %p79
        %p207 = pneg %p103
        %p208 = pneg %p100
        %p209 = pneg %p124
        %p210 = pneg %p121
        %p211 = pneg %p150
        %p212 = pneg %p147
        %s213 = sand.u32 %s137, 1
        %s214 = scalar_lea.sflag [#allocation3], %s213
        %s215 = sand.u32 %s137, 1
        %s216 = smul.addr %s215, 8
        %s217 = scalar_lea.vmem [#allocation2], %s216
        %p218 = scmp.lt.s32.totalorder %s19, 1
        %s219 = scalar_select %p218, %s19, 1
        %s220 = smul.addr %s219, 2
        %s221 = smul.addr %s220, 8
        %s222 = scalar_lea.vmem %s0, %s221
        %v224 = vld [vmem:[%s222] sm:$0xff]
        %v225 = vld [vmem:[%s222 + $0x8] sm:$0xff]
        %v226 = vpack.c.bf16 %v224, %v224
        %v227 = vpack.c.bf16 %v225, %v225
        %v228 = vld [vmem:[%s1] sm:$0xf]
        %v229 = vld [vmem:[%s1 + $0x4] sm:$0xf]
        %v230 = vld [vmem:[%s1 + $0x8] sm:$0xf]
        %v231 = vld [vmem:[%s1 + $0xc] sm:$0xf]
        %v232 = vld [vmem:[%s1 + $0x10] sm:$0xf]
        %v233 = vld [vmem:[%s1 + $0x14] sm:$0xf]
        %v234 = vld [vmem:[%s1 + $0x18] sm:$0xf]
        %v235 = vld [vmem:[%s1 + $0x1c] sm:$0xf]
        %v236 = vld [vmem:[%s1 + $0x20] sm:$0xf]
        %v237 = vld [vmem:[%s1 + $0x24] sm:$0xf]
        %v238 = vld [vmem:[%s1 + $0x28] sm:$0xf]
        %v239 = vld [vmem:[%s1 + $0x2c] sm:$0xf]
        %v240 = vld [vmem:[%s1 + $0x30] sm:$0xf]
        %v241 = vld [vmem:[%s1 + $0x34] sm:$0xf]
        %v242 = vld [vmem:[%s1 + $0x38] sm:$0xf]
        %v243 = vld [vmem:[%s1 + $0x3c] sm:$0xf]
        %v244 = vld [vmem:[%s1 + $0x40] sm:$0xf]
        %v245 = vld [vmem:[%s1 + $0x44] sm:$0xf]
        %v246 = vld [vmem:[%s1 + $0x48] sm:$0xf]
        %v247 = vld [vmem:[%s1 + $0x4c] sm:$0xf]
        %v248 = vld [vmem:[%s1 + $0x50] sm:$0xf]
        %v249 = vld [vmem:[%s1 + $0x54] sm:$0xf]
        %v250 = vld [vmem:[%s1 + $0x58] sm:$0xf]
        %v251 = vld [vmem:[%s1 + $0x5c] sm:$0xf]
        %v252 = vld [vmem:[%s1 + $0x60] sm:$0xf]
        %v253 = vld [vmem:[%s1 + $0x64] sm:$0xf]
        %v254 = vld [vmem:[%s1 + $0x68] sm:$0xf]
        %v255 = vld [vmem:[%s1 + $0x6c] sm:$0xf]
        %v256 = vld [vmem:[%s1 + $0x70] sm:$0xf]
        %v257 = vld [vmem:[%s1 + $0x74] sm:$0xf]
        %v258 = vld [vmem:[%s1 + $0x78] sm:$0xf]
        %v259 = vld [vmem:[%s1 + $0x7c] sm:$0xf]
        %v260 = vld [vmem:[%s2] sm:$0x1]
        %v262 = vlaneseq
        %v263 = vshrl.u32 %v262, 7
        %v264 = vsub.s32 0, %v263
        %v265 = vrot.slane %v260, %v264
        %v299 = vunpack.c.l.b16 %v228
        %v300 = vunpack.c.l.b16 %v229
        %v301 = vunpack.c.l.b16 %v230
        %v302 = vunpack.c.l.b16 %v231
        %v303 = vunpack.c.l.b16 %v232
        %v304 = vunpack.c.l.b16 %v233
        %v305 = vunpack.c.l.b16 %v234
        %v306 = vunpack.c.l.b16 %v235
        %v307 = vunpack.c.l.b16 %v236
        %v308 = vunpack.c.l.b16 %v237
        %v309 = vunpack.c.l.b16 %v238
        %v310 = vunpack.c.l.b16 %v239
        %v311 = vunpack.c.l.b16 %v240
        %v312 = vunpack.c.l.b16 %v241
        %v313 = vunpack.c.l.b16 %v242
        %v314 = vunpack.c.l.b16 %v243
        %v315 = vunpack.c.l.b16 %v244
        %v316 = vunpack.c.l.b16 %v245
        %v317 = vunpack.c.l.b16 %v246
        %v318 = vunpack.c.l.b16 %v247
        %v319 = vunpack.c.l.b16 %v248
        %v320 = vunpack.c.l.b16 %v249
        %v321 = vunpack.c.l.b16 %v250
        %v322 = vunpack.c.l.b16 %v251
        %v323 = vunpack.c.l.b16 %v252
        %v324 = vunpack.c.l.b16 %v253
        %v325 = vunpack.c.l.b16 %v254
        %v326 = vunpack.c.l.b16 %v255
        %v327 = vunpack.c.l.b16 %v256
        %v328 = vunpack.c.l.b16 %v257
        %v329 = vunpack.c.l.b16 %v258
        %v330 = vunpack.c.l.b16 %v259
        %v331 = vpack.c.b16 %v300, %v299
        %v332 = vpack.c.b16 %v302, %v301
        %v333 = vpack.c.b16 %v304, %v303
        %v334 = vpack.c.b16 %v306, %v305
        %v335 = vpack.c.b16 %v308, %v307
        %v336 = vpack.c.b16 %v310, %v309
        %v337 = vpack.c.b16 %v312, %v311
        %v338 = vpack.c.b16 %v314, %v313
        %v339 = vpack.c.b16 %v316, %v315
        %v340 = vpack.c.b16 %v318, %v317
        %v341 = vpack.c.b16 %v320, %v319
        %v342 = vpack.c.b16 %v322, %v321
        %v343 = vpack.c.b16 %v324, %v323
        %v344 = vpack.c.b16 %v326, %v325
        %v345 = vpack.c.b16 %v328, %v327
        %v346 = vpack.c.b16 %v330, %v329
        %363 = vmatprep.subr.bf16.mxu0 0
        %364 = vmatpush1.bf16.msra.mxu0 %v331
        %365 = vmatprep.subr.bf16.mxu0 0
        %366 = vmatpush1.bf16.msra.mxu0 %v332
        %367 = vmatprep.subr.bf16.mxu0 0
        %368 = vmatpush1.bf16.msra.mxu0 %v333
        %369 = vmatprep.subr.bf16.mxu0 0
        %370 = vmatpush1.bf16.msra.mxu0 %v334
        %371 = vmatprep.subr.bf16.mxu0 0
        %372 = vmatpush1.bf16.msra.mxu0 %v335
        %373 = vmatprep.subr.bf16.mxu0 0
        %374 = vmatpush1.bf16.msra.mxu0 %v336
        %375 = vmatprep.subr.bf16.mxu0 0
        %376 = vmatpush1.bf16.msra.mxu0 %v337
        %377 = vmatprep.subr.bf16.mxu0 0
        %378 = vmatpush1.bf16.msra.mxu0 %v338
        %379 = vmatprep.subr.bf16.mxu0 0
        %380 = vmatpush1.bf16.msra.mxu0 %v339
        %381 = vmatprep.subr.bf16.mxu0 0
        %382 = vmatpush1.bf16.msra.mxu0 %v340
        %383 = vmatprep.subr.bf16.mxu0 0
        %384 = vmatpush1.bf16.msra.mxu0 %v341
        %385 = vmatprep.subr.bf16.mxu0 0
        %386 = vmatpush1.bf16.msra.mxu0 %v342
        %387 = vmatprep.subr.bf16.mxu0 0
        %388 = vmatpush1.bf16.msra.mxu0 %v343
        %389 = vmatprep.subr.bf16.mxu0 0
        %390 = vmatpush1.bf16.msra.mxu0 %v344
        %391 = vmatprep.subr.bf16.mxu0 0
        %392 = vmatpush1.bf16.msra.mxu0 %v345
        %393 = vmatprep.subr.bf16.mxu0 0
        %394 = vmatpush1.bf16.msra.mxu0 %v346
        %395 = vmatprep.mubr.bf16.mxu0 %v227
        %396 = vmatmul.mubr.bf16.gmra.mrb[0].mxu0 %v226
        %v397 = vpop.f32.mrb[0].mxu0
        %v398 = vadd.f32 %v265, %v397
        %v399 = vpop.f32.mrb[0].mxu0
        %v400 = vpop.f32.mrb[0].mxu0
        %v401 = vpop.f32.mrb[0].mxu0
        %402 = vdwg.mxu0
        %v403 = vmul.f32 %v398, 0.5
        %v404 = vtanh.pop %v403
        %v405 = vadd.f32 %v404, 1.0
        %v406 = vmul.f32 %v405, 0.5
        %v407 = vpack.c.bf16 %v406, %v406
        %v408 = vld [vmem:[%s3] sm:$0xf]
        %v409 = vld [vmem:[%s3 + $0x4] sm:$0xf]
        %v410 = vld [vmem:[%s3 + $0x8] sm:$0xf]
        %v411 = vld [vmem:[%s3 + $0xc] sm:$0xf]
        %v412 = vld [vmem:[%s3 + $0x10] sm:$0xf]
        %v413 = vld [vmem:[%s3 + $0x14] sm:$0xf]
        %v414 = vld [vmem:[%s3 + $0x18] sm:$0xf]
        %v415 = vld [vmem:[%s3 + $0x1c] sm:$0xf]
        %v416 = vld [vmem:[%s3 + $0x20] sm:$0xf]
        %v417 = vld [vmem:[%s3 + $0x24] sm:$0xf]
        %v418 = vld [vmem:[%s3 + $0x28] sm:$0xf]
        %v419 = vld [vmem:[%s3 + $0x2c] sm:$0xf]
        %v420 = vld [vmem:[%s3 + $0x30] sm:$0xf]
        %v421 = vld [vmem:[%s3 + $0x34] sm:$0xf]
        %v422 = vld [vmem:[%s3 + $0x38] sm:$0xf]
        %v423 = vld [vmem:[%s3 + $0x3c] sm:$0xf]
        %v424 = vld [vmem:[%s4] sm:$0x1]
        %v426 = vlaneseq
        %v427 = vshrl.u32 %v426, 7
        %v428 = vsub.s32 0, %v427
        %v429 = vrot.slane %v424, %v428
        %v447 = vunpack.c.l.b16 %v408
        %v448 = vunpack.c.l.b16 %v409
        %v449 = vunpack.c.l.b16 %v410
        %v450 = vunpack.c.l.b16 %v411
        %v451 = vunpack.c.l.b16 %v412
        %v452 = vunpack.c.l.b16 %v413
        %v453 = vunpack.c.l.b16 %v414
        %v454 = vunpack.c.l.b16 %v415
        %v455 = vunpack.c.l.b16 %v416
        %v456 = vunpack.c.l.b16 %v417
        %v457 = vunpack.c.l.b16 %v418
        %v458 = vunpack.c.l.b16 %v419
        %v459 = vunpack.c.l.b16 %v420
        %v460 = vunpack.c.l.b16 %v421
        %v461 = vunpack.c.l.b16 %v422
        %v462 = vunpack.c.l.b16 %v423
        %v463 = vpack.c.b16 %v448, %v447
        %v464 = vpack.c.b16 %v450, %v449
        %v465 = vpack.c.b16 %v452, %v451
        %v466 = vpack.c.b16 %v454, %v453
        %v467 = vpack.c.b16 %v456, %v455
        %v468 = vpack.c.b16 %v458, %v457
        %v469 = vpack.c.b16 %v460, %v459
        %v470 = vpack.c.b16 %v462, %v461
        %479 = vmatprep.subr.bf16.mxu0 0
        %480 = vmatpush1.bf16.msra.mxu0 %v463
        %481 = vmatprep.subr.bf16.mxu0 0
        %482 = vmatpush1.bf16.msra.mxu0 %v464
        %483 = vmatprep.subr.bf16.mxu0 0
        %484 = vmatpush1.bf16.msra.mxu0 %v465
        %485 = vmatprep.subr.bf16.mxu0 0
        %486 = vmatpush1.bf16.msra.mxu0 %v466
        %487 = vmatprep.subr.bf16.mxu0 0
        %488 = vmatpush1.bf16.msra.mxu0 %v467
        %489 = vmatprep.subr.bf16.mxu0 0
        %490 = vmatpush1.bf16.msra.mxu0 %v468
        %491 = vmatprep.subr.bf16.mxu0 0
        %492 = vmatpush1.bf16.msra.mxu0 %v469
        %493 = vmatprep.subr.bf16.mxu0 0
        %494 = vmatpush1.bf16.msra.mxu0 %v470
        %495 = vmatprep.subr.bf16.mxu0 0
        %496 = vmatpush1.bf16.msra.mxu0 0
        %497 = vmatprep.subr.bf16.mxu0 0
        %498 = vmatpush1.bf16.msra.mxu0 0
        %499 = vmatprep.subr.bf16.mxu0 0
        %500 = vmatpush1.bf16.msra.mxu0 0
        %501 = vmatprep.subr.bf16.mxu0 0
        %502 = vmatpush1.bf16.msra.mxu0 0
        %503 = vmatprep.subr.bf16.mxu0 0
        %504 = vmatpush1.bf16.msra.mxu0 0
        %505 = vmatprep.subr.bf16.mxu0 0
        %506 = vmatpush1.bf16.msra.mxu0 0
        %507 = vmatprep.subr.bf16.mxu0 0
        %508 = vmatpush1.bf16.msra.mxu0 0
        %509 = vmatprep.subr.bf16.mxu0 0
        %510 = vmatpush1.bf16.msra.mxu0 0
        %511 = vmatprep.mubr.bf16.mxu0 0
        %512 = vmatmul.mubr.bf16.gmra.mrb[0].mxu0 %v407
        %v513 = vpop.f32.mrb[0].mxu0
        %v514 = vadd.f32 %v429, %v513
        %v515 = vpop.f32.mrb[0].mxu0
        %v516 = vpop.f32.mrb[0].mxu0
        %v517 = vpop.f32.mrb[0].mxu0
        %518 = vdwg.mxu0
        %519 = vst [vmem:[%s217] sm:$0xff] %v514
        %s520 = sand.u32 %s137, 1
        %s521 = scalar_lea.sflag [#allocation3], %s520
        %s522 = sand.u32 %s137, 1
        %s523 = smul.addr %s522, 8
        %s524 = scalar_lea.vmem [#allocation2], %s523
        // Predicated region
        $region41: #{fully_connected_network.1} parent=39 // pred_check
          %p525 = pneg %p147
        $region42: #{fully_connected_network.1} parent=39 // pred_check_branch
          %527 = sbr.rel (%p525) target = $region44
        $region43: #{fully_connected_network.1} parent=39 // pred_region
          %s529 = ssub.s32 128, 128
          %530 = vsyncadd %s521, %s529
          %s531 = smul.addr %s19, 128
          %s532 = scalar_lea.hbm %s5, %s531
          %s534 = sshll.u32 %s524, 4
          %s535 = int_to_ptr.vmem [resolvable:$true] %s534
          %537 = dma.vmem_to_hbm [thread:$0]  %s535, 128, %s532, %s521
        $region44: #{fully_connected_network.1} parent=39 // pred_fallthru
          _
      $region40: #{fully_connected_network.1} parent=5 // pred_fallthru
        _
      %p538 = scmp.le.s32.totalorder 2, %s14
      // Predicated region
      $region45: #{fully_connected_network.1} parent=5 // pred_check
        %p539 = pneg %p538
      $region46: #{fully_connected_network.1} parent=5 // pred_check_branch
        %541 = sbr.rel (%p539) target = $region48
      $region47: #{fully_connected_network.1} parent=5 // pred_region
        %s542 = ssub.s32 %s14, 2
        // Predicated region
        $region49: #{fully_connected_network.1} parent=47 // pred_check
          %p543 = pneg %p153
        $region50: #{fully_connected_network.1} parent=47 // pred_check_branch
          %545 = sbr.rel (%p543) target = $region52
        $region51: #{fully_connected_network.1} parent=47 // pred_region
          %s546 = sand.u32 %s138, 1
          %s547 = scalar_lea.sflag [#allocation3], %s546
          %s548 = sand.u32 %s138, 1
          %s549 = smul.addr %s548, 8
          %s550 = scalar_lea.vmem [#allocation2], %s549
          %551 = dma.done %s547, 128
        $region52: #{fully_connected_network.1} parent=47 // pred_fallthru
          _
      $region48: #{fully_connected_network.1} parent=5 // pred_fallthru
        _
    $region6: #{fully_connected_network.1} parent=1 // loop_footer
      %s18 = sadd.s32 1, %s14
    $region7: #{fully_connected_network.1} parent=1 // loop_footer_branch
      %13 = sbr.rel target = $region3
    $region8: #{fully_connected_network.1} parent=1 // loop_exit
      _
    %552 = vsyncpa [#allocation3], 1
    %s553 = scalar_lea.sflag [#allocation3], 1
    %554 = vsyncpa %s553, 1

</llo_original>
